<compile_context>
chip_gen: v7x
topology: tpu7x:2x2x1
jax: 0.10.0
libtpu: 0.0.40
codegen_flags: <defaults>
</compile_context>

<pallas_src>
import jax
import jax.numpy as jnp
from jax import lax
from jax.experimental import pallas as pl
from jax.experimental.pallas import tpu as pltpu

_LRELU_SLOPE = 0.2


def _disc_kernel(xT_ref, wbig_ref, w2row_ref, out_ref):
    # xT_ref:    (192, TILE_N) bf16  flattened (h,w,c) input, samples on lanes
    # wbig_ref:  (128, 192)    bf16  conv1 lowered to a dense matrix (rows = p*8+c)
    # w2row_ref: (1, 128)      f32   conv2 weight as a row vector
    # out_ref:   (1, 1, TILE_N) f32  sigmoid(logits), lane-dense
    y1 = jnp.dot(wbig_ref[...], xT_ref[...],
                 preferred_element_type=jnp.float32)          # (128, TILE_N)
    y1 = jnp.where(y1 >= 0, y1, _LRELU_SLOPE * y1)            # LeakyReLU(0.2)
    y2 = jnp.dot(w2row_ref[...], y1,
                 preferred_element_type=jnp.float32)          # (1, TILE_N)
    out_ref[...] = (1.0 / (1.0 + jnp.exp(-y2))).reshape(out_ref.shape)


def _build_wbig(w1_oihw):
    """Lower Conv2d(3->8, k=4, s=2, p=1) on an 8x8 input to a (128, 192) matrix.

    Row index  = (oh*4 + ow) * 8 + cout        (conv1 output position/channel)
    Col index  = h*24 + w*3 + cin              (flattened HWC input)
    """
    w1_hwio = jnp.transpose(w1_oihw, (2, 3, 1, 0)).astype(jnp.float32)  # (4,4,3,8)
    blocks = []
    for oh in range(4):
        for ow in range(4):
            # Place the 4x4 kernel on a padded 10x10 canvas at its receptive
            # field, then crop away the padding taps.
            canvas = jnp.zeros((10, 10, 3, 8), jnp.float32)
            canvas = lax.dynamic_update_slice(canvas, w1_hwio, (2 * oh, 2 * ow, 0, 0))
            blk = canvas[1:9, 1:9]               # (8, 8, 3, 8)
            blocks.append(blk.reshape(192, 8))   # cols = h*24 + w*3 + cin
    wbig = jnp.stack(blocks, axis=0)             # (16, 192, 8)
    wbig = jnp.transpose(wbig, (0, 2, 1)).reshape(128, 192)
    return wbig


@jax.jit
def discriminator_forward(x_nchw, w1_oihw, w2_oihw):
    """x_nchw: (N,3,8,8) f32, w1: (8,3,4,4), w2: (1,8,4,4) -> (N,1,1,1) f32."""
    n = x_nchw.shape[0]
    tile_n = min(1024, ((n + 127) // 128) * 128)       # lane-aligned batch tile
    n_pad = ((n + tile_n - 1) // tile_n) * tile_n
    num_tiles = n_pad // tile_n

    # Glue: pad batch, flatten to (h,w,c), put samples on the lane axis, bf16.
    xp = jnp.pad(x_nchw, ((0, n_pad - n), (0, 0), (0, 0), (0, 0)))
    xT = jnp.transpose(xp, (2, 3, 1, 0)).reshape(192, n_pad).astype(jnp.bfloat16)

    wbig = _build_wbig(w1_oihw).astype(jnp.bfloat16)                  # (128, 192)
    # conv2 (O=1, I=8, 4, 4) -> (kh, kw, cin, 1) -> (1, 128), index = p*8 + cin
    w2row = jnp.transpose(w2_oihw, (2, 3, 1, 0)).reshape(1, 128).astype(jnp.float32)

    out = pl.pallas_call(
        _disc_kernel,
        grid=(num_tiles,),
        in_specs=[
            pl.BlockSpec((192, tile_n), lambda i: (0, i)),   # input tile, pipelined
            pl.BlockSpec((128, 192), lambda i: (0, 0)),      # conv1 matrix (resident)
            pl.BlockSpec((1, 128), lambda i: (0, 0)),        # conv2 row (resident)
        ],
        out_specs=pl.BlockSpec((1, 1, tile_n), lambda i: (i, 0, 0)),
        out_shape=jax.ShapeDtypeStruct((num_tiles, 1, tile_n), jnp.float32),
        compiler_params=pltpu.CompilerParams(
            dimension_semantics=("parallel",)),
    )(xT, wbig, w2row)

    return out.reshape(n_pad)[:n].reshape(n, 1, 1, 1)


def _reference_forward(x_nchw, w1_oihw, w2_oihw):
    """Pure-JAX f32 reference mirroring the PyTorch graph."""
    dn = ('NCHW', 'OIHW', 'NCHW')
    y = lax.conv_general_dilated(x_nchw, w1_oihw, window_strides=(2, 2),
                                 padding=((1, 1), (1, 1)), dimension_numbers=dn)
    y = jnp.where(y >= 0, y, _LRELU_SLOPE * y)
    y = lax.conv_general_dilated(y, w2_oihw, window_strides=(1, 1),
                                 padding='VALID', dimension_numbers=dn)
    return 1.0 / (1.0 + jnp.exp(-y))


if __name__ == "__main__":
    key = jax.random.PRNGKey(0)
    k_x, k_w1, k_w2 = jax.random.split(key, 3)

    N = 2
    x = jax.random.normal(k_x, (N, 3, 8, 8), dtype=jnp.float32)
    # weights_init: nn.init.normal_(weight, 0.0, 0.02), bias=False.
    w1 = 0.02 * jax.random.normal(k_w1, (8, 3, 4, 4), dtype=jnp.float32)   # conv1 OIHW
    w2 = 0.02 * jax.random.normal(k_w2, (1, 8, 4, 4), dtype=jnp.float32)   # conv2 OIHW

    out = jax.block_until_ready(discriminator_forward(x, w1, w2))
    ref = _reference_forward(x, w1, w2)

    assert out.shape == (N, 1, 1, 1)
    # bf16 inputs with f32 accumulation: relaxed tolerance vs. the f32 reference.
    assert jnp.allclose(out, ref, atol=2e-3, rtol=1e-2), (out, ref)

    print("KERNEL_OK")
</pallas_src>

<mosaic_0001>
module attributes {stable_mosaic.version = 11 : i64} {
  func.func @_disc_kernel(%arg0: i32, %arg1: memref<192x128xbf16, #tpu.memory_space<vmem>>, %arg2: memref<128x192xbf16, #tpu.memory_space<vmem>>, %arg3: memref<1x128xf32, #tpu.memory_space<vmem>>, %arg4: memref<1x1x128xf32, #tpu.memory_space<vmem>>) attributes {dimension_semantics = [#tpu.dimension_semantics<parallel>], iteration_bounds = array<i64: 1>, scalar_prefetch = 0 : i64, scratch_operands = 0 : i64, tpu.core_type = #tpu.core_type<tc>, window_params = [{transform_indices = @transform_0, window_bounds = array<i64: 192, 128>}, {pipeline_mode = #tpu.pipeline_mode<synchronous>, transform_indices = @transform_1, window_bounds = array<i64: 128, 192>}, {pipeline_mode = #tpu.pipeline_mode<synchronous>, transform_indices = @transform_2, window_bounds = array<i64: 1, 128>}, {transform_indices = @transform_3, window_bounds = array<i64: 1, 1, 128>}]} {
    %c0 = arith.constant 0 : index
    %c0_0 = arith.constant 0 : index
    %0 = vector.load %arg2[%c0, %c0_0] : memref<128x192xbf16, #tpu.memory_space<vmem>>, vector<128x192xbf16>
    %c0_1 = arith.constant 0 : index
    %c0_2 = arith.constant 0 : index
    %1 = vector.load %arg1[%c0_1, %c0_2] : memref<192x128xbf16, #tpu.memory_space<vmem>>, vector<192x128xbf16>
    %cst = arith.constant dense<0.000000e+00> : vector<128x128xf32>
    %2 = tpu.matmul %0, %1, %cst {dimension_numbers = #tpu.dot_dimension_numbers<[1], [0], [0], [1], [0, 0, 1, 1], [], []>} : vector<128x192xbf16>, vector<192x128xbf16>, vector<128x128xf32> -> vector<128x128xf32>
    %cst_3 = arith.constant 0.000000e+00 : f32
    %3 = vector.broadcast %cst_3 : f32 to vector<128x128xf32>
    %4 = arith.cmpf oge, %2, %3 : vector<128x128xf32>
    %cst_4 = arith.constant 2.000000e-01 : f32
    %5 = vector.broadcast %cst_4 : f32 to vector<128x128xf32>
    %6 = arith.mulf %5, %2 : vector<128x128xf32>
    %7 = arith.select %4, %2, %6 : vector<128x128xi1>, vector<128x128xf32>
    %c0_5 = arith.constant 0 : index
    %c0_6 = arith.constant 0 : index
    %8 = vector.load %arg3[%c0_5, %c0_6] : memref<1x128xf32, #tpu.memory_space<vmem>>, vector<1x128xf32>
    %cst_7 = arith.constant dense<0.000000e+00> : vector<1x128xf32>
    %9 = tpu.matmul %8, %7, %cst_7 {dimension_numbers = #tpu.dot_dimension_numbers<[1], [0], [0], [1], [0, 0, 1, 1], [], []>} : vector<1x128xf32>, vector<128x128xf32>, vector<1x128xf32> -> vector<1x128xf32>
    %cst_8 = arith.constant 0.000000e+00 : f32
    %10 = vector.broadcast %cst_8 : f32 to vector<1x128xf32>
    %11 = arith.subf %10, %9 : vector<1x128xf32>
    %12 = math.exp %11 : vector<1x128xf32>
    %cst_9 = arith.constant 1.000000e+00 : f32
    %13 = vector.broadcast %cst_9 : f32 to vector<1x128xf32>
    %14 = arith.addf %13, %12 : vector<1x128xf32>
    %cst_10 = arith.constant 1.000000e+00 : f32
    %15 = vector.broadcast %cst_10 : f32 to vector<1x128xf32>
    %16 = arith.divf %15, %14 : vector<1x128xf32>
    %17 = vector.shape_cast %16 : vector<1x128xf32> to vector<1x1x128xf32>
    %c0_11 = arith.constant 0 : index
    %c0_12 = arith.constant 0 : index
    %c0_13 = arith.constant 0 : index
    %18 = vector.load %arg4[%c0_11, %c0_12, %c0_13] : memref<1x1x128xf32, #tpu.memory_space<vmem>>, vector<1x1x128xf32>
    tpu.vector_store %arg4[%c0_11, %c0_12, %c0_13], %17 {strides = array<i32>} : memref<1x1x128xf32, #tpu.memory_space<vmem>>, vector<1x1x128xf32>,
    return
  }
  func.func @transform_0(%arg0: i32) -> (i32, i32) {
    %c0_i32 = arith.constant 0 : i32
    %c0_i32_0 = arith.constant 0 : i32
    return %c0_i32, %arg0 : i32, i32
  }
  func.func @transform_1(%arg0: i32) -> (i32, i32) {
    %c0_i32 = arith.constant 0 : i32
    %c0_i32_0 = arith.constant 0 : i32
    %c0_i32_1 = arith.constant 0 : i32
    return %c0_i32, %c0_i32_0 : i32, i32
  }
  func.func @transform_2(%arg0: i32) -> (i32, i32) {
    %c0_i32 = arith.constant 0 : i32
    %c0_i32_0 = arith.constant 0 : i32
    %c0_i32_1 = arith.constant 0 : i32
    return %c0_i32, %c0_i32_0 : i32, i32
  }
  func.func @transform_3(%arg0: i32) -> (i32, i32, i32) {
    %c0_i32 = arith.constant 0 : i32
    %c0_i32_0 = arith.constant 0 : i32
    %c0_i32_1 = arith.constant 0 : i32
    return %arg0, %c0_i32, %c0_i32_0 : i32, i32, i32
  }
}

</mosaic_0001>

<llo_original>
// kernel: discriminator_forward.1
$region0: #{discriminator_forward.1}
  #allocation0 [shape = 'u32[]', space=smem, size = 0x4, offset = 0x4, fixed_abs, tag = 'smem constant byte address 0x4 - core index']
  #allocation1 [shape = 'u32[144,128]{1,0:T(1,128)}', space=vmem, size = 0x12000, scoped, tag = 'internal scratch']
  %s0 = inlined_call_operand.vmem [shape: bf16[192,128], index: 0, kind: input, shape index: {}]
  %s1 = inlined_call_operand.vmem [shape: bf16[128,192], index: 1, kind: input, shape index: {}]
  %s2 = inlined_call_operand.vmem [shape: f32[1,128], index: 2, kind: input, shape index: {}]
  %s3 = inlined_call_operand.vmem [shape: f32[1,1,128], index: 3, kind: output, shape index: {}]
  %s4 = sld [smem:[#allocation0]]
  $region22: #{discriminator_forward.1} parent=0
    _
  %s6 = ssub.s32 1, %s4
  %s7 = scalar_select 0, %s6, %s4
  // Predicated region
  $region2: #{discriminator_forward.1} parent=0 // pred_check
    _
  $region3: #{discriminator_forward.1} parent=0 // pred_check_branch
    %9 = sbr.rel (0) target = $region5
  $region4: #{discriminator_forward.1} parent=0 // pred_region
    _
  $region5: #{discriminator_forward.1} parent=0 // pred_fallthru
    _
  // Predicated region
  $region6: #{discriminator_forward.1} parent=0 // pred_check
    _
  $region7: #{discriminator_forward.1} parent=0 // pred_check_branch
    %11 = sbr.rel (0) target = $region9
  $region8: #{discriminator_forward.1} parent=0 // pred_region
    _
  $region9: #{discriminator_forward.1} parent=0 // pred_fallthru
    _
  // Predicated region
  $region10: #{discriminator_forward.1} parent=0 // pred_check
    _
  $region11: #{discriminator_forward.1} parent=0 // pred_check_branch
    %13 = sbr.rel (0) target = $region13
  $region12: #{discriminator_forward.1} parent=0 // pred_region
    _
  $region13: #{discriminator_forward.1} parent=0 // pred_fallthru
    _
  %v15 = vld [vmem:[%s1] sm:$0xff]
  %v16 = vld [vmem:[%s1 + $0x8] sm:$0xff]
  %v17 = vld [vmem:[%s1 + $0x10] sm:$0xff]
  %v18 = vld [vmem:[%s1 + $0x18] sm:$0xff]
  %v19 = vld [vmem:[%s1 + $0x20] sm:$0xff]
  %v20 = vld [vmem:[%s1 + $0x28] sm:$0xff]
  %v21 = vld [vmem:[%s1 + $0x30] sm:$0xff]
  %v22 = vld [vmem:[%s1 + $0x38] sm:$0xff]
  %v23 = vld [vmem:[%s1 + $0x40] sm:$0xff]
  %v24 = vld [vmem:[%s1 + $0x48] sm:$0xff]
  %v25 = vld [vmem:[%s1 + $0x50] sm:$0xff]
  %v26 = vld [vmem:[%s1 + $0x58] sm:$0xff]
  %v27 = vld [vmem:[%s1 + $0x60] sm:$0xff]
  %v28 = vld [vmem:[%s1 + $0x68] sm:$0xff]
  %v29 = vld [vmem:[%s1 + $0x70] sm:$0xff]
  %v30 = vld [vmem:[%s1 + $0x78] sm:$0xff]
  %v31 = vld [vmem:[%s0] sm:$0xf]
  %v32 = vld [vmem:[%s0 + $0x4] sm:$0xf]
  %v33 = vld [vmem:[%s0 + $0x8] sm:$0xf]
  %v34 = vld [vmem:[%s0 + $0xc] sm:$0xf]
  %v35 = vld [vmem:[%s0 + $0x10] sm:$0xf]
  %v36 = vld [vmem:[%s0 + $0x14] sm:$0xf]
  %v37 = vld [vmem:[%s0 + $0x18] sm:$0xf]
  %v38 = vld [vmem:[%s0 + $0x1c] sm:$0xf]
  %v39 = vld [vmem:[%s0 + $0x20] sm:$0xf]
  %v40 = vld [vmem:[%s0 + $0x24] sm:$0xf]
  %v41 = vld [vmem:[%s0 + $0x28] sm:$0xf]
  %v42 = vld [vmem:[%s0 + $0x2c] sm:$0xf]
  %v43 = vld [vmem:[%s0 + $0x30] sm:$0xf]
  %v44 = vld [vmem:[%s0 + $0x34] sm:$0xf]
  %v45 = vld [vmem:[%s0 + $0x38] sm:$0xf]
  %v46 = vld [vmem:[%s0 + $0x3c] sm:$0xf]
  %v47 = vld [vmem:[%s0 + $0x40] sm:$0xf]
  %v48 = vld [vmem:[%s0 + $0x44] sm:$0xf]
  %v49 = vld [vmem:[%s0 + $0x48] sm:$0xf]
  %v50 = vld [vmem:[%s0 + $0x4c] sm:$0xf]
  %v51 = vld [vmem:[%s0 + $0x50] sm:$0xf]
  %v52 = vld [vmem:[%s0 + $0x54] sm:$0xf]
  %v53 = vld [vmem:[%s0 + $0x58] sm:$0xf]
  %v54 = vld [vmem:[%s0 + $0x5c] sm:$0xf]
  %v71 = vunpack.c.l.b16 %v15
  %v72 = vunpack.c.h.b16 %v15
  %v73 = vunpack.c.l.b16 %v16
  %v74 = vunpack.c.h.b16 %v16
  %v75 = vunpack.c.l.b16 %v17
  %v76 = vunpack.c.h.b16 %v17
  %v77 = vunpack.c.l.b16 %v18
  %v78 = vunpack.c.h.b16 %v18
  %v79 = vunpack.c.l.b16 %v19
  %v80 = vunpack.c.h.b16 %v19
  %v81 = vunpack.c.l.b16 %v20
  %v82 = vunpack.c.h.b16 %v20
  %v83 = vunpack.c.l.b16 %v21
  %v84 = vunpack.c.h.b16 %v21
  %v85 = vunpack.c.l.b16 %v22
  %v86 = vunpack.c.h.b16 %v22
  %v87 = vunpack.c.l.b16 %v23
  %v88 = vunpack.c.h.b16 %v23
  %v89 = vunpack.c.l.b16 %v24
  %v90 = vunpack.c.h.b16 %v24
  %v91 = vunpack.c.l.b16 %v25
  %v92 = vunpack.c.h.b16 %v25
  %v93 = vunpack.c.l.b16 %v26
  %v94 = vunpack.c.h.b16 %v26
  %v95 = vunpack.c.l.b16 %v27
  %v96 = vunpack.c.h.b16 %v27
  %v97 = vunpack.c.l.b16 %v28
  %v98 = vunpack.c.h.b16 %v28
  %v99 = vunpack.c.l.b16 %v29
  %v100 = vunpack.c.h.b16 %v29
  %v101 = vunpack.c.l.b16 %v30
  %v102 = vunpack.c.h.b16 %v30
  %v103 = vpack.c.b16 %v73, %v71
  %v104 = vpack.c.b16 %v74, %v72
  %v105 = vpack.c.b16 %v77, %v75
  %v106 = vpack.c.b16 %v78, %v76
  %v107 = vpack.c.b16 %v81, %v79
  %v108 = vpack.c.b16 %v82, %v80
  %v109 = vpack.c.b16 %v85, %v83
  %v110 = vpack.c.b16 %v86, %v84
  %v111 = vpack.c.b16 %v89, %v87
  %v112 = vpack.c.b16 %v90, %v88
  %v113 = vpack.c.b16 %v93, %v91
  %v114 = vpack.c.b16 %v94, %v92
  %v115 = vpack.c.b16 %v97, %v95
  %v116 = vpack.c.b16 %v98, %v96
  %v117 = vpack.c.b16 %v101, %v99
  %v118 = vpack.c.b16 %v102, %v100
  %v151 = vunpack.c.l.b16 %v31
  %v152 = vunpack.c.l.b16 %v32
  %v153 = vunpack.c.l.b16 %v33
  %v154 = vunpack.c.l.b16 %v34
  %v155 = vunpack.c.l.b16 %v35
  %v156 = vunpack.c.l.b16 %v36
  %v157 = vunpack.c.l.b16 %v37
  %v158 = vunpack.c.l.b16 %v38
  %v159 = vunpack.c.l.b16 %v39
  %v160 = vunpack.c.l.b16 %v40
  %v161 = vunpack.c.l.b16 %v41
  %v162 = vunpack.c.l.b16 %v42
  %v163 = vunpack.c.l.b16 %v43
  %v164 = vunpack.c.l.b16 %v44
  %v165 = vunpack.c.l.b16 %v45
  %v166 = vunpack.c.l.b16 %v46
  %v167 = vunpack.c.l.b16 %v47
  %v168 = vunpack.c.l.b16 %v48
  %v169 = vunpack.c.l.b16 %v49
  %v170 = vunpack.c.l.b16 %v50
  %v171 = vunpack.c.l.b16 %v51
  %v172 = vunpack.c.l.b16 %v52
  %v173 = vunpack.c.l.b16 %v53
  %v174 = vunpack.c.l.b16 %v54
  %v175 = vpack.c.b16 %v152, %v151
  %v176 = vpack.c.b16 %v154, %v153
  %v177 = vpack.c.b16 %v156, %v155
  %v178 = vpack.c.b16 %v158, %v157
  %v179 = vpack.c.b16 %v160, %v159
  %v180 = vpack.c.b16 %v162, %v161
  %v181 = vpack.c.b16 %v164, %v163
  %v182 = vpack.c.b16 %v166, %v165
  %v183 = vpack.c.b16 %v168, %v167
  %v184 = vpack.c.b16 %v170, %v169
  %v185 = vpack.c.b16 %v172, %v171
  %v186 = vpack.c.b16 %v174, %v173
  %vm199 = vcmask 523264
  %v201 = vsel %vm199, %v104, 0
  %v204 = vsel %vm199, %v106, 0
  %v207 = vsel %vm199, %v108, 0
  %v210 = vsel %vm199, %v110, 0
  %v213 = vsel %vm199, %v112, 0
  %v216 = vsel %vm199, %v114, 0
  %v219 = vsel %vm199, %v116, 0
  %v222 = vsel %vm199, %v118, 0
  %224 = vmatprep.subr.bf16.mxu0 0
  %225 = vmatpush1.bf16.msra.mxu0 %v175
  %226 = vmatprep.subr.bf16.mxu0 0
  %227 = vmatpush1.bf16.msra.mxu0 %v176
  %228 = vmatprep.subr.bf16.mxu0 0
  %229 = vmatpush1.bf16.msra.mxu0 %v177
  %230 = vmatprep.subr.bf16.mxu0 0
  %231 = vmatpush1.bf16.msra.mxu0 %v178
  %232 = vmatprep.subr.bf16.mxu0 0
  %233 = vmatpush1.bf16.msra.mxu0 %v179
  %234 = vmatprep.subr.bf16.mxu0 0
  %235 = vmatpush1.bf16.msra.mxu0 %v180
  %236 = vmatprep.subr.bf16.mxu0 0
  %237 = vmatpush1.bf16.msra.mxu0 %v181
  %238 = vmatprep.subr.bf16.mxu0 0
  %239 = vmatpush1.bf16.msra.mxu0 %v182
  %240 = vmatprep.subr.bf16.mxu0 0
  %241 = vmatpush1.bf16.msra.mxu0 %v183
  %242 = vmatprep.subr.bf16.mxu0 0
  %243 = vmatpush1.bf16.msra.mxu0 %v184
  %244 = vmatprep.subr.bf16.mxu0 0
  %245 = vmatpush1.bf16.msra.mxu0 %v185
  %246 = vmatprep.subr.bf16.mxu0 0
  %247 = vmatpush1.bf16.msra.mxu0 %v186
  %248 = vmatprep.subr.bf16.mxu0 0
  %249 = vmatpush1.bf16.msra.mxu0 0
  %250 = vmatprep.subr.bf16.mxu0 0
  %251 = vmatpush1.bf16.msra.mxu0 0
  %252 = vmatprep.subr.bf16.mxu0 0
  %253 = vmatpush1.bf16.msra.mxu0 0
  %254 = vmatprep.subr.bf16.mxu0 0
  %255 = vmatpush1.bf16.msra.mxu0 0
  %256 = vmatprep.mubr.bf16.mxu0 %v201
  %257 = vmatmul.mubr.bf16.gmra.mrb[0].mxu0 %v103
  %v258 = vpop.f32.mrb[0].mxu0
  %v259 = vadd.f32 0.0, %v258
  %v260 = vpop.f32.mrb[0].mxu0
  %v261 = vpop.f32.mrb[0].mxu0
  %v262 = vadd.f32 0.0, %v261
  %v263 = vpop.f32.mrb[0].mxu0
  %264 = vmatprep.mubr.bf16.mxu0 %v204
  %265 = vmatmul.mubr.bf16.gmra.mrb[0].mxu0 %v105
  %v266 = vpop.f32.mrb[0].mxu0
  %v267 = vadd.f32 0.0, %v266
  %v268 = vpop.f32.mrb[0].mxu0
  %v269 = vpop.f32.mrb[0].mxu0
  %v270 = vadd.f32 0.0, %v269
  %v271 = vpop.f32.mrb[0].mxu0
  %272 = vmatprep.mubr.bf16.mxu0 %v207
  %273 = vmatmul.mubr.bf16.gmra.mrb[0].mxu0 %v107
  %v274 = vpop.f32.mrb[0].mxu0
  %v275 = vadd.f32 0.0, %v274
  %v276 = vpop.f32.mrb[0].mxu0
  %v277 = vpop.f32.mrb[0].mxu0
  %v278 = vadd.f32 0.0, %v277
  %v279 = vpop.f32.mrb[0].mxu0
  %280 = vmatprep.mubr.bf16.mxu0 %v210
  %281 = vmatmul.mubr.bf16.gmra.mrb[0].mxu0 %v109
  %v282 = vpop.f32.mrb[0].mxu0
  %v283 = vadd.f32 0.0, %v282
  %v284 = vpop.f32.mrb[0].mxu0
  %v285 = vpop.f32.mrb[0].mxu0
  %v286 = vadd.f32 0.0, %v285
  %v287 = vpop.f32.mrb[0].mxu0
  %288 = vmatprep.mubr.bf16.mxu0 %v213
  %289 = vmatmul.mubr.bf16.gmra.mrb[0].mxu0 %v111
  %v290 = vpop.f32.mrb[0].mxu0
  %v291 = vadd.f32 0.0, %v290
  %v292 = vpop.f32.mrb[0].mxu0
  %v293 = vpop.f32.mrb[0].mxu0
  %v294 = vadd.f32 0.0, %v293
  %v295 = vpop.f32.mrb[0].mxu0
  %296 = vmatprep.mubr.bf16.mxu0 %v216
  %297 = vmatmul.mubr.bf16.gmra.mrb[0].mxu0 %v113
  %v298 = vpop.f32.mrb[0].mxu0
  %v299 = vadd.f32 0.0, %v298
  %v300 = vpop.f32.mrb[0].mxu0
  %v301 = vpop.f32.mrb[0].mxu0
  %v302 = vadd.f32 0.0, %v301
  %v303 = vpop.f32.mrb[0].mxu0
  %304 = vmatprep.mubr.bf16.mxu0 %v219
  %305 = vmatmul.mubr.bf16.gmra.mrb[0].mxu0 %v115
  %v306 = vpop.f32.mrb[0].mxu0
  %v307 = vadd.f32 0.0, %v306
  %v308 = vpop.f32.mrb[0].mxu0
  %v309 = vpop.f32.mrb[0].mxu0
  %v310 = vadd.f32 0.0, %v309
  %v311 = vpop.f32.mrb[0].mxu0
  %312 = vmatprep.mubr.bf16.mxu0 %v222
  %313 = vmatmul.mubr.bf16.gmra.mrb[0].mxu0 %v117
  %v314 = vpop.f32.mrb[0].mxu0
  %v315 = vadd.f32 0.0, %v314
  %v316 = vpop.f32.mrb[0].mxu0
  %v317 = vpop.f32.mrb[0].mxu0
  %v318 = vadd.f32 0.0, %v317
  %v319 = vpop.f32.mrb[0].mxu0
  %320 = vdwg.mxu0
  %vm321 = vcmp.ge.f32.partialorder %v259, 0.0
  %vm322 = vcmp.ge.f32.partialorder %v262, 0.0
  %vm323 = vcmp.ge.f32.partialorder %v267, 0.0
  %vm324 = vcmp.ge.f32.partialorder %v270, 0.0
  %vm325 = vcmp.ge.f32.partialorder %v275, 0.0
  %vm326 = vcmp.ge.f32.partialorder %v278, 0.0
  %vm327 = vcmp.ge.f32.partialorder %v283, 0.0
  %vm328 = vcmp.ge.f32.partialorder %v286, 0.0
  %vm329 = vcmp.ge.f32.partialorder %v291, 0.0
  %vm330 = vcmp.ge.f32.partialorder %v294, 0.0
  %vm331 = vcmp.ge.f32.partialorder %v299, 0.0
  %vm332 = vcmp.ge.f32.partialorder %v302, 0.0
  %vm333 = vcmp.ge.f32.partialorder %v307, 0.0
  %vm334 = vcmp.ge.f32.partialorder %v310, 0.0
  %vm335 = vcmp.ge.f32.partialorder %v315, 0.0
  %vm336 = vcmp.ge.f32.partialorder %v318, 0.0
  %v337 = vmul.f32 %v259, 0.2
  %v338 = vmul.f32 %v262, 0.2
  %v339 = vmul.f32 %v267, 0.2
  %v340 = vmul.f32 %v270, 0.2
  %v341 = vmul.f32 %v275, 0.2
  %v342 = vmul.f32 %v278, 0.2
  %v343 = vmul.f32 %v283, 0.2
  %v344 = vmul.f32 %v286, 0.2
  %v345 = vmul.f32 %v291, 0.2
  %v346 = vmul.f32 %v294, 0.2
  %v347 = vmul.f32 %v299, 0.2
  %v348 = vmul.f32 %v302, 0.2
  %v349 = vmul.f32 %v307, 0.2
  %v350 = vmul.f32 %v310, 0.2
  %v351 = vmul.f32 %v315, 0.2
  %v352 = vmul.f32 %v318, 0.2
  %v353 = vsel %vm321, %v259, %v337
  %v354 = vsel %vm322, %v262, %v338
  %v355 = vsel %vm323, %v267, %v339
  %v356 = vsel %vm324, %v270, %v340
  %v357 = vsel %vm325, %v275, %v341
  %v358 = vsel %vm326, %v278, %v342
  %v359 = vsel %vm327, %v283, %v343
  %v360 = vsel %vm328, %v286, %v344
  %v361 = vsel %vm329, %v291, %v345
  %v362 = vsel %vm330, %v294, %v346
  %v363 = vsel %vm331, %v299, %v347
  %v364 = vsel %vm332, %v302, %v348
  %v365 = vsel %vm333, %v307, %v349
  %v366 = vsel %vm334, %v310, %v350
  %v367 = vsel %vm335, %v315, %v351
  %v368 = vsel %vm336, %v318, %v352
  %v369 = vld [vmem:[%s2] sm:$0x1]
  %370 = vmatprep.subr.mxu0 0.0
  %371 = vmatpush1.msra.mxu0 %v353
  %372 = vmatprep.subr.mxu0 0.0
  %373 = vmatpush1.msra.mxu0 %v354
  %374 = vmatprep.subr.mxu0 0.0
  %375 = vmatpush1.msra.mxu0 %v355
  %376 = vmatprep.subr.mxu0 0.0
  %377 = vmatpush1.msra.mxu0 %v356
  %378 = vmatprep.subr.mxu0 0.0
  %379 = vmatpush1.msra.mxu0 %v357
  %380 = vmatprep.subr.mxu0 0.0
  %381 = vmatpush1.msra.mxu0 %v358
  %382 = vmatprep.subr.mxu0 0.0
  %383 = vmatpush1.msra.mxu0 %v359
  %384 = vmatprep.subr.mxu0 0.0
  %385 = vmatpush1.msra.mxu0 %v360
  %386 = vmatprep.subr.mxu0 0.0
  %387 = vmatpush1.msra.mxu0 %v361
  %388 = vmatprep.subr.mxu0 0.0
  %389 = vmatpush1.msra.mxu0 %v362
  %390 = vmatprep.subr.mxu0 0.0
  %391 = vmatpush1.msra.mxu0 %v363
  %392 = vmatprep.subr.mxu0 0.0
  %393 = vmatpush1.msra.mxu0 %v364
  %394 = vmatprep.subr.mxu0 0.0
  %395 = vmatpush1.msra.mxu0 %v365
  %396 = vmatprep.subr.mxu0 0.0
  %397 = vmatpush1.msra.mxu0 %v366
  %398 = vmatprep.subr.mxu0 0.0
  %399 = vmatpush1.msra.mxu0 %v367
  %400 = vmatprep.subr.mxu0 0.0
  %401 = vmatpush1.msra.mxu0 %v368
  %402 = vmatprep.subr.mxu0 0.0
  %403 = vmatpush1.msra.mxu0 0.0
  %404 = vmatprep.subr.mxu0 0.0
  %405 = vmatpush1.msra.mxu0 0.0
  %406 = vmatprep.subr.mxu0 0.0
  %407 = vmatpush1.msra.mxu0 0.0
  %408 = vmatprep.subr.mxu0 0.0
  %409 = vmatpush1.msra.mxu0 0.0
  %410 = vmatprep.subr.mxu0 0.0
  %411 = vmatpush1.msra.mxu0 0.0
  %412 = vmatprep.subr.mxu0 0.0
  %413 = vmatpush1.msra.mxu0 0.0
  %414 = vmatprep.subr.mxu0 0.0
  %415 = vmatpush1.msra.mxu0 0.0
  %416 = vmatprep.subr.mxu0 0.0
  %417 = vmatpush1.msra.mxu0 0.0
  %418 = vmatprep.subr.mxu0 0.0
  %419 = vmatpush1.msra.mxu0 0.0
  %420 = vmatprep.subr.mxu0 0.0
  %421 = vmatpush1.msra.mxu0 0.0
  %422 = vmatprep.subr.mxu0 0.0
  %423 = vmatpush1.msra.mxu0 0.0
  %424 = vmatprep.subr.mxu0 0.0
  %425 = vmatpush1.msra.mxu0 0.0
  %426 = vmatprep.subr.mxu0 0.0
  %427 = vmatpush1.msra.mxu0 0.0
  %428 = vmatprep.subr.mxu0 0.0
  %429 = vmatpush1.msra.mxu0 0.0
  %430 = vmatprep.subr.mxu0 0.0
  %431 = vmatpush1.msra.mxu0 0.0
  %432 = vmatprep.subr.mxu0 0.0
  %433 = vmatpush1.msra.mxu0 0.0
  %434 = vmatprep.mubr.f32.mxu0 0.0
  %435 = vmatmul.mubr.f32.gmra.mrb[0].mxu0 %v369
  %v436 = vpop.f32.mrb[0].mxu0
  %v437 = vadd.f32 0.0, %v436
  %v438 = vpop.f32.mrb[0].mxu0
  %439 = vdwg.mxu0
  %v440 = vsub.f32 0.0, %v437
  %v441 = vmul.f32 %v440, 1.442695
  %v442 = vpow.pop %v441
  %v443 = vadd.f32 %v442, 1.0
  %v444 = vrcp.pop %v443
  %v445 = vmul.f32 1.0, %v444
  %446 = vst [vmem:[%s3] sm:$0x1] %v445
  // Predicated region
  $region14: #{discriminator_forward.1} parent=0 // pred_check
    _
  $region15: #{discriminator_forward.1} parent=0 // pred_check_branch
    %448 = sbr.rel (0) target = $region17
  $region16: #{discriminator_forward.1} parent=0 // pred_region
    _
  $region17: #{discriminator_forward.1} parent=0 // pred_fallthru
    _
  // Predicated region
  $region18: #{discriminator_forward.1} parent=0 // pred_check
    _
  $region19: #{discriminator_forward.1} parent=0 // pred_check_branch
    %450 = sbr.rel (0) target = $region21
  $region20: #{discriminator_forward.1} parent=0 // pred_region
    _
  $region21: #{discriminator_forward.1} parent=0 // pred_fallthru
    _

</llo_original>
